<compile_context>
chip_gen: v7x
topology: tpu7x:2x2x1
jax: 0.10.0
libtpu: 0.0.40
codegen_flags: <defaults>
</compile_context>

<pallas_src>
import functools

import jax
import jax.numpy as jnp
from jax.experimental import pallas as pl
from jax.experimental.pallas import tpu as pltpu

_EPS = 1e-8
_VMEM_LIMIT = 32 * 1024 * 1024          # scoped-VMEM ceiling, safe on v5e/v6e/v7x
_SINGLE_PASS_BUDGET = 20 * 1024 * 1024  # per-step working-set budget (resident path)
_HW_TILE_TARGET = 2 * 1024 * 1024       # ~2 MiB input blocks in the tiled fallback


# ---------------------- primary: single-pass resident kernel ----------------------
def _fused_kernel(x_ref, o_ref, *, C, HW):
    # x_ref: (G, mb, C*HW)  — each m's full (C,H,W) slab on the lane axis.
    # o_ref: (G, mb, (C+1)*HW) — passthrough lanes followed by the stat channel.
    G, mb, _ = x_ref.shape
    xt = x_ref[...]                                     # load once, reuse below
    x = xt.astype(jnp.float32)
    mu = jnp.mean(x, axis=0, keepdims=True)             # mean over the group dim G
    d = x - mu
    sd = jnp.sqrt(jnp.mean(d * d, axis=0) + _EPS)       # (mb, C*HW)
    # Per-m statistic: single cross-lane reduce, one global divide by C*HW.
    stat = jnp.sum(sd, axis=-1, keepdims=True) * (1.0 / (C * HW))   # (mb, 1)
    stat_lanes = jnp.broadcast_to(stat[None, :, :].astype(o_ref.dtype),
                                  (G, mb, HW))
    # Lane-axis concat -> one unmasked, lane-dense store of the whole block.
    o_ref[...] = jnp.concatenate([xt.astype(o_ref.dtype), stat_lanes], axis=-1)


# ------------------------- fallback pass 1: statistics ----------------------------
def _stats_kernel(x_ref, stat_ref, acc_ref, *, C, HW):
    # x_ref:    (G, mb*C, hw_t) sublane-dense input tile
    # stat_ref: (mb, 1) f32     per-m statistic (written on the last HW tile)
    # acc_ref:  (mb*C, 1) f32   narrow running sum of sd across HW tiles
    j = pl.program_id(1)

    x = x_ref[...].astype(jnp.float32)
    mu = jnp.mean(x, axis=0, keepdims=True)             # mean over the group dim G
    d = x - mu
    sd = jnp.sqrt(jnp.mean(d * d, axis=0) + _EPS)       # (mb*C, hw_t)

    @pl.when(j == 0)
    def _():
        acc_ref[...] = jnp.zeros_like(acc_ref)

    # Per-tile lane reduce into a narrow accumulator (XLU has slack in this
    # HBM-bound kernel); scratch VMEM stays constant as hw_t grows.
    acc_ref[...] += jnp.sum(sd, axis=-1, keepdims=True)

    @pl.when(j == pl.num_programs(1) - 1)
    def _():
        mb = stat_ref.shape[0]
        per_m = jnp.sum(acc_ref[...].reshape(mb, C), axis=-1, keepdims=True)
        stat_ref[...] = per_m * (1.0 / (C * HW))


# ---------------------- fallback pass 2: fused dense writeout ---------------------
def _write_kernel(x_ref, stat_ref, o_ref, *, C):
    # x_ref: (G, mb*C, hw_t); stat_ref: (mb, 1) f32; o_ref: (G, mb*(C+1), hw_t)
    G, mbc, hw_t = x_ref.shape
    mb = mbc // C
    xt = x_ref[...].astype(o_ref.dtype)                 # load the tile once
    stat = stat_ref[...].astype(o_ref.dtype)            # (mb, 1)
    # Interleave passthrough rows with the broadcast statistic in registers,
    # then issue one unmasked, sublane-dense store (no 5/8-sublane masking).
    pieces = []
    for m in range(mb):                                 # static unroll, mb is small
        pieces.append(xt[:, m * C:(m + 1) * C, :])
        pieces.append(jnp.broadcast_to(stat[m, 0], (G, 1, hw_t)))
    o_ref[...] = jnp.concatenate(pieces, axis=1)        # (G, mb*(C+1), hw_t)


# ------------------------------------ wrapper -------------------------------------
def _group_sizes(N, group_size):
    G = min(group_size, N) if N % group_size == 0 else N
    return G, N // G


def _pick_mb_single(M, per_m_bytes):
    # Legal mb: divides M and (mb % 8 == 0 or mb == M) so all blocked sublane
    # dims stay aligned.  Prefer choices leaving >= 2 grid steps (both v7x TCs).
    cands = [d for d in range(1, M + 1)
             if M % d == 0 and (d % 8 == 0 or d == M)
             and d * per_m_bytes <= _SINGLE_PASS_BUDGET]
    if not cands:
        return None
    multi = [d for d in cands if M // d >= 2]
    return max(multi) if multi else max(cands)


def _pick_mb_tiled(M):
    # mb == 8 (or mb == M) keeps mb*C and mb*(C+1) sublane-legal for any C.
    return 8 if (M % 8 == 0 and M > 8) else M


def _pick_hw_tile(HW, row_bytes, hw_tile):
    if hw_tile is not None:
        if hw_tile != HW:
            assert HW % hw_tile == 0 and hw_tile % 128 == 0, (HW, hw_tile)
        return hw_tile
    if HW % 128 != 0:
        return HW                        # single full-width block (always legal)
    # Target ~2 MiB input blocks so per-step overhead is hidden by the transfer.
    t = max(128, min(HW, (_HW_TILE_TARGET // max(row_bytes, 1)) // 128 * 128))
    while t > 128 and HW % t != 0:
        t -= 128
    return t if HW % t == 0 else HW


def minibatch_stddev(x, group_size=4, *, hw_tile=None, force_two_pass=False):
    """x: (N, C, H, W) -> (N, C+1, H, W), matching the PyTorch module."""
    N, C, H, W = x.shape
    G, M = _group_sizes(N, group_size)
    HW = H * W
    isz = x.dtype.itemsize

    # --------------------- single-pass resident fast path ------------------------
    if not force_two_pass and hw_tile is None:
        in_b = G * C * HW * isz
        out_b = G * (C + 1) * HW * isz
        # double-buffered in/out blocks + f32 compute temporaries (rough, conservative)
        per_m = 2 * (in_b + out_b) + 4 * G * (C + 1) * HW * 4
        mb = _pick_mb_single(M, per_m)
        if mb is not None:
            xk = x.reshape(G, M, C * HW)
            out = pl.pallas_call(
                functools.partial(_fused_kernel, C=C, HW=HW),
                out_shape=jax.ShapeDtypeStruct((G, M, (C + 1) * HW), x.dtype),
                grid=(M // mb,),
                in_specs=[pl.BlockSpec((G, mb, C * HW), lambda i: (0, i, 0))],
                out_specs=pl.BlockSpec((G, mb, (C + 1) * HW), lambda i: (0, i, 0)),
                compiler_params=pltpu.CompilerParams(
                    dimension_semantics=("parallel",),
                    vmem_limit_bytes=_VMEM_LIMIT),
            )(xk)
            return out.reshape(N, C + 1, H, W)

    # ------------------------- two-pass tiled fallback ---------------------------
    mb = _pick_mb_tiled(M)
    hw_t = _pick_hw_tile(HW, G * mb * C * isz, hw_tile)
    grid = (M // mb, HW // hw_t)

    xk = x.reshape(G, M * C, HW)         # sublane-dense channel packing, HW on lanes

    params_stats = pltpu.CompilerParams(
        dimension_semantics=("parallel", "arbitrary"),   # reduction axis last
        vmem_limit_bytes=_VMEM_LIMIT)
    params_write = pltpu.CompilerParams(
        dimension_semantics=("parallel", "parallel"),
        vmem_limit_bytes=_VMEM_LIMIT)

    # Pass 1: per-m stddev statistic (global sum over C*HW, divided once).
    stat = pl.pallas_call(
        functools.partial(_stats_kernel, C=C, HW=HW),
        out_shape=jax.ShapeDtypeStruct((M, 1), jnp.float32),
        grid=grid,
        in_specs=[pl.BlockSpec((G, mb * C, hw_t), lambda i, j: (0, i, j))],
        out_specs=pl.BlockSpec((mb, 1), lambda i, j: (i, 0)),
        scratch_shapes=[pltpu.VMEM((mb * C, 1), jnp.float32)],
        compiler_params=params_stats,
    )(xk)

    # Pass 2: stream x once more, emit the sublane-dense interleaved output.
    out = pl.pallas_call(
        functools.partial(_write_kernel, C=C),
        out_shape=jax.ShapeDtypeStruct((G, M * (C + 1), HW), x.dtype),
        grid=grid,
        in_specs=[pl.BlockSpec((G, mb * C, hw_t), lambda i, j: (0, i, j)),
                  pl.BlockSpec((mb, 1), lambda i, j: (i, 0))],
        out_specs=pl.BlockSpec((G, mb * (C + 1), hw_t), lambda i, j: (0, i, j)),
        compiler_params=params_write,
    )(xk, stat)

    return out.reshape(N, C + 1, H, W)


# ------------------------------------ reference ------------------------------------
def _reference(x, group_size=4):
    N, C, H, W = x.shape
    G = min(group_size, N) if N % group_size == 0 else N
    M = N // G
    y = x.reshape(G, M, C, H, W)
    y = y - jnp.mean(y, axis=0, keepdims=True)
    y = jnp.mean(y ** 2, axis=0)
    y = jnp.sqrt(y + 1e-8)
    y = jnp.mean(y.reshape(M, -1), axis=1).reshape(M, 1, 1, 1)
    y = jnp.tile(y, (G, 1, H, W))
    return jnp.concatenate([x, y], axis=1)


if __name__ == "__main__":
    key = jax.random.PRNGKey(0)
    k1, k2 = jax.random.split(key)

    # Main shape: N=8, C=4, 16x16, group_size=4 -> G=4, M=2.
    N, C, H, W = 8, 4, 16, 16
    x = jax.random.normal(k1, (N, C, H, W), dtype=jnp.float32)
    ref = _reference(x, group_size=4)

    # Default path: single-pass resident kernel (one read, one dense write).
    out = jax.block_until_ready(minibatch_stddev(x, group_size=4))
    assert out.shape == (N, C + 1, H, W), out.shape
    assert jnp.allclose(out, ref, atol=1e-5, rtol=1e-5), "mismatch (single-pass)"

    # Forced two-pass tiled fallback: HW=256 split into 2 x 128-lane tiles
    # exercises the init / accumulate / finalize path and the dense writer.
    out2 = jax.block_until_ready(
        minibatch_stddev(x, group_size=4, force_two_pass=True, hw_tile=128))
    assert jnp.allclose(out2, ref, atol=1e-5, rtol=1e-5), "mismatch (two-pass tiled)"

    # N not divisible by group_size -> module semantics fall back to G=N, M=1.
    x3 = jax.random.normal(k2, (6, 4, 8, 8), dtype=jnp.float32)
    ref3 = _reference(x3, group_size=4)
    out3 = jax.block_until_ready(minibatch_stddev(x3, group_size=4))
    assert jnp.allclose(out3, ref3, atol=1e-5, rtol=1e-5), "mismatch (ragged group)"

    print("KERNEL_OK")
</pallas_src>

<mosaic_0001>
module attributes {stable_mosaic.version = 11 : i64} {
  func.func @_fused_kernel(%arg0: i32, %arg1: memref<4x2x1024xf32, #tpu.memory_space<vmem>>, %arg2: memref<4x2x1280xf32, #tpu.memory_space<vmem>>) attributes {dimension_semantics = [#tpu.dimension_semantics<parallel>], iteration_bounds = array<i64: 1>, scalar_prefetch = 0 : i64, scratch_operands = 0 : i64, tpu.core_type = #tpu.core_type<tc>, window_params = [{transform_indices = @transform_0, window_bounds = array<i64: 4, 2, 1024>}, {transform_indices = @transform_1, window_bounds = array<i64: 4, 2, 1280>}]} {
    %c0 = arith.constant 0 : index
    %c0_0 = arith.constant 0 : index
    %c0_1 = arith.constant 0 : index
    %0 = vector.load %arg1[%c0, %c0_0, %c0_1] : memref<4x2x1024xf32, #tpu.memory_space<vmem>>, vector<4x2x1024xf32>
    %cst = arith.constant dense<0.000000e+00> : vector<2x1024xf32>
    %1 = vector.multi_reduction <add>, %0, %cst [0] : vector<4x2x1024xf32> to vector<2x1024xf32>
    %2 = vector.shape_cast %1 : vector<2x1024xf32> to vector<1x2x1024xf32>
    %cst_2 = arith.constant 4.000000e+00 : f32
    %3 = vector.broadcast %cst_2 : f32 to vector<1x2x1024xf32>
    %4 = arith.divf %2, %3 : vector<1x2x1024xf32>
    %5 = vector.broadcast %4 : vector<1x2x1024xf32> to vector<4x2x1024xf32>
    %6 = arith.subf %0, %5 : vector<4x2x1024xf32>
    %7 = arith.mulf %6, %6 : vector<4x2x1024xf32>
    %cst_3 = arith.constant dense<0.000000e+00> : vector<2x1024xf32>
    %8 = vector.multi_reduction <add>, %7, %cst_3 [0] : vector<4x2x1024xf32> to vector<2x1024xf32>
    %cst_4 = arith.constant 4.000000e+00 : f32
    %9 = vector.broadcast %cst_4 : f32 to vector<2x1024xf32>
    %10 = arith.divf %8, %9 : vector<2x1024xf32>
    %cst_5 = arith.constant 9.99999993E-9 : f32
    %11 = vector.broadcast %cst_5 : f32 to vector<2x1024xf32>
    %12 = arith.addf %10, %11 : vector<2x1024xf32>
    %13 = math.sqrt %12 : vector<2x1024xf32>
    %cst_6 = arith.constant dense<0.000000e+00> : vector<2xf32>
    %14 = vector.multi_reduction <add>, %13, %cst_6 [1] : vector<2x1024xf32> to vector<2xf32>
    %15 = vector.shape_cast %14 : vector<2xf32> to vector<2x1xf32>
    %cst_7 = arith.constant 9.765625E-4 : f32
    %16 = vector.broadcast %cst_7 : f32 to vector<2x1xf32>
    %17 = arith.mulf %15, %16 : vector<2x1xf32>
    %18 = vector.shape_cast %17 : vector<2x1xf32> to vector<1x2x1xf32>
    %19 = vector.shape_cast %18 : vector<1x2x1xf32> to vector<1x2x1xf32>
    %20 = vector.broadcast %19 : vector<1x2x1xf32> to vector<4x2x256xf32>
    %21 = tpu.concatenate %0, %20 in 2 : vector<4x2x1024xf32>, vector<4x2x256xf32> -> vector<4x2x1280xf32>
    %c0_8 = arith.constant 0 : index
    %c0_9 = arith.constant 0 : index
    %c0_10 = arith.constant 0 : index
    %22 = vector.load %arg2[%c0_8, %c0_9, %c0_10] : memref<4x2x1280xf32, #tpu.memory_space<vmem>>, vector<4x2x1280xf32>
    tpu.vector_store %arg2[%c0_8, %c0_9, %c0_10], %21 {strides = array<i32>} : memref<4x2x1280xf32, #tpu.memory_space<vmem>>, vector<4x2x1280xf32>,
    return
  }
  func.func @transform_0(%arg0: i32) -> (i32, i32, i32) {
    %c0_i32 = arith.constant 0 : i32
    %c0_i32_0 = arith.constant 0 : i32
    %c0_i32_1 = arith.constant 0 : i32
    return %c0_i32, %arg0, %c0_i32_0 : i32, i32, i32
  }
  func.func @transform_1(%arg0: i32) -> (i32, i32, i32) {
    %c0_i32 = arith.constant 0 : i32
    %c0_i32_0 = arith.constant 0 : i32
    %c0_i32_1 = arith.constant 0 : i32
    return %c0_i32, %arg0, %c0_i32_0 : i32, i32, i32
  }
}

</mosaic_0001>

<llo_original>
// kernel: tpu_custom_call.1
$region0: #{tpu_custom_call.1}
  #allocation0 [shape = 'u32[]', space=smem, size = 0x4, offset = 0x4, fixed_abs, tag = 'smem constant byte address 0x4 - core index']
  #allocation1 [shape = 'u32[144,128]{1,0:T(1,128)}', space=vmem, size = 0x12000, scoped, tag = 'internal scratch']
  %s0 = inlined_call_operand.hbm [shape: f32[4,2,1024], index: 0, kind: input, shape index: {}]
  %s1 = inlined_call_operand.hbm [shape: f32[4,2,1280], index: 1, kind: output, shape index: {}]
  %s2 = sld [smem:[#allocation0]]
  $region18: #{tpu_custom_call.1} parent=0
    _
  %s4 = ssub.s32 1, %s2
  %s5 = scalar_select 0, %s4, %s2
  $region1: #{tpu_custom_call.1} parent=0
    #allocation2 [shape = 'u8[32768]{0}', space=vmem, size = 0x8000, scoped, tag = 'input window, operand 0, single buffered']
    #allocation3 [shape = 's32[1]{0}', space=sflag, size = 0x4, scoped, tag = 'scoped memory for tpu_custom_call.1']
    #allocation4 [shape = 's32[1]{0}', space=sflag, size = 0x4, scoped, tag = 'scoped memory for tpu_custom_call.1']
    #allocation5 [shape = 'u8[40960]{0}', space=vmem, size = 0xa000, scoped, tag = 'output window, operand 0, single buffered']
    %6 = vsyncpa [#allocation3], 0
    %7 = vsyncpa [#allocation4], 0
    // Predicated region
    $region2: #{tpu_custom_call.1} parent=1 // pred_check
      _
    $region3: #{tpu_custom_call.1} parent=1 // pred_check_branch
      %9 = sbr.rel (0) target = $region5
    $region4: #{tpu_custom_call.1} parent=1 // pred_region
      %s11 = ssub.s32 1024, 1024
      %12 = vsyncadd [#allocation3], %s11
      %s13 = sshll.u32 [#allocation2], 4
      %s14 = int_to_ptr.vmem [resolvable:$true] %s13
      %19 = dma.hbm_to_vmem [thread:$0]  %s0, 1024, %s14, [#allocation3], 256, 256, 16
    $region5: #{tpu_custom_call.1} parent=1 // pred_fallthru
      _
    // Predicated region
    $region6: #{tpu_custom_call.1} parent=1 // pred_check
      _
    $region7: #{tpu_custom_call.1} parent=1 // pred_check_branch
      %21 = sbr.rel (0) target = $region9
    $region8: #{tpu_custom_call.1} parent=1 // pred_region
      %22 = dma.done [#allocation3], 1024
    $region9: #{tpu_custom_call.1} parent=1 // pred_fallthru
      _
    %v23 = vld [vmem:[#allocation2] sm:$0xff]
    %v24 = vld [vmem:[#allocation2 + $0x8] sm:$0xff]
    %v25 = vld [vmem:[#allocation2 + $0x10] sm:$0xff]
    %v26 = vld [vmem:[#allocation2 + $0x18] sm:$0xff]
    %v27 = vld [vmem:[#allocation2 + $0x20] sm:$0xff]
    %v28 = vld [vmem:[#allocation2 + $0x28] sm:$0xff]
    %v29 = vld [vmem:[#allocation2 + $0x30] sm:$0xff]
    %v30 = vld [vmem:[#allocation2 + $0x38] sm:$0xff]
    %v39 = vcombine.high %v23, %v23
    %v41 = vunpack.c.l.s4 1983009808
    %v42 = vunpack.c.0.s8 %v41
    %v43 = vlaneseq
    %v44 = vshrl.u32 %v43, 7
    %v45 = vsub.s32 %v42, %v44
    %v46 = vrot.slane %v23, %v45
    %v48 = vunpack.c.l.s4 1983009808
    %v49 = vunpack.c.0.s8 %v48
    %v50 = vlaneseq
    %v51 = vshrl.u32 %v50, 7
    %v52 = vsub.s32 %v49, %v51
    %v53 = vrot.slane %v39, %v52
    %v54 = vcombine.high %v46, %v46
    %v55 = vcombine.high %v53, %v53
    %v56 = vcombine.high %v24, %v24
    %v58 = vunpack.c.l.s4 1983009808
    %v59 = vunpack.c.0.s8 %v58
    %v60 = vlaneseq
    %v61 = vshrl.u32 %v60, 7
    %v62 = vsub.s32 %v59, %v61
    %v63 = vrot.slane %v24, %v62
    %v65 = vunpack.c.l.s4 1983009808
    %v66 = vunpack.c.0.s8 %v65
    %v67 = vlaneseq
    %v68 = vshrl.u32 %v67, 7
    %v69 = vsub.s32 %v66, %v68
    %v70 = vrot.slane %v56, %v69
    %v71 = vcombine.high %v63, %v63
    %v72 = vcombine.high %v70, %v70
    %v73 = vcombine.high %v25, %v25
    %v75 = vunpack.c.l.s4 1983009808
    %v76 = vunpack.c.0.s8 %v75
    %v77 = vlaneseq
    %v78 = vshrl.u32 %v77, 7
    %v79 = vsub.s32 %v76, %v78
    %v80 = vrot.slane %v25, %v79
    %v82 = vunpack.c.l.s4 1983009808
    %v83 = vunpack.c.0.s8 %v82
    %v84 = vlaneseq
    %v85 = vshrl.u32 %v84, 7
    %v86 = vsub.s32 %v83, %v85
    %v87 = vrot.slane %v73, %v86
    %v88 = vcombine.high %v80, %v80
    %v89 = vcombine.high %v87, %v87
    %v90 = vcombine.high %v26, %v26
    %v92 = vunpack.c.l.s4 1983009808
    %v93 = vunpack.c.0.s8 %v92
    %v94 = vlaneseq
    %v95 = vshrl.u32 %v94, 7
    %v96 = vsub.s32 %v93, %v95
    %v97 = vrot.slane %v26, %v96
    %v99 = vunpack.c.l.s4 1983009808
    %v100 = vunpack.c.0.s8 %v99
    %v101 = vlaneseq
    %v102 = vshrl.u32 %v101, 7
    %v103 = vsub.s32 %v100, %v102
    %v104 = vrot.slane %v90, %v103
    %v105 = vcombine.high %v97, %v97
    %v106 = vcombine.high %v104, %v104
    %v107 = vcombine.high %v27, %v27
    %v109 = vunpack.c.l.s4 1983009808
    %v110 = vunpack.c.0.s8 %v109
    %v111 = vlaneseq
    %v112 = vshrl.u32 %v111, 7
    %v113 = vsub.s32 %v110, %v112
    %v114 = vrot.slane %v27, %v113
    %v116 = vunpack.c.l.s4 1983009808
    %v117 = vunpack.c.0.s8 %v116
    %v118 = vlaneseq
    %v119 = vshrl.u32 %v118, 7
    %v120 = vsub.s32 %v117, %v119
    %v121 = vrot.slane %v107, %v120
    %v122 = vcombine.high %v114, %v114
    %v123 = vcombine.high %v121, %v121
    %v124 = vcombine.high %v28, %v28
    %v126 = vunpack.c.l.s4 1983009808
    %v127 = vunpack.c.0.s8 %v126
    %v128 = vlaneseq
    %v129 = vshrl.u32 %v128, 7
    %v130 = vsub.s32 %v127, %v129
    %v131 = vrot.slane %v28, %v130
    %v133 = vunpack.c.l.s4 1983009808
    %v134 = vunpack.c.0.s8 %v133
    %v135 = vlaneseq
    %v136 = vshrl.u32 %v135, 7
    %v137 = vsub.s32 %v134, %v136
    %v138 = vrot.slane %v124, %v137
    %v139 = vcombine.high %v131, %v131
    %v140 = vcombine.high %v138, %v138
    %v141 = vcombine.high %v29, %v29
    %v143 = vunpack.c.l.s4 1983009808
    %v144 = vunpack.c.0.s8 %v143
    %v145 = vlaneseq
    %v146 = vshrl.u32 %v145, 7
    %v147 = vsub.s32 %v144, %v146
    %v148 = vrot.slane %v29, %v147
    %v150 = vunpack.c.l.s4 1983009808
    %v151 = vunpack.c.0.s8 %v150
    %v152 = vlaneseq
    %v153 = vshrl.u32 %v152, 7
    %v154 = vsub.s32 %v151, %v153
    %v155 = vrot.slane %v141, %v154
    %v156 = vcombine.high %v148, %v148
    %v157 = vcombine.high %v155, %v155
    %v158 = vcombine.high %v30, %v30
    %v160 = vunpack.c.l.s4 1983009808
    %v161 = vunpack.c.0.s8 %v160
    %v162 = vlaneseq
    %v163 = vshrl.u32 %v162, 7
    %v164 = vsub.s32 %v161, %v163
    %v165 = vrot.slane %v30, %v164
    %v167 = vunpack.c.l.s4 1983009808
    %v168 = vunpack.c.0.s8 %v167
    %v169 = vlaneseq
    %v170 = vshrl.u32 %v169, 7
    %v171 = vsub.s32 %v168, %v170
    %v172 = vrot.slane %v158, %v171
    %v173 = vcombine.high %v165, %v165
    %v174 = vcombine.high %v172, %v172
    %vm207 = vcmask 1041408
    %v208 = vsel %vm207, %v46, 0.0
    %v209 = vsel %vm207, %v80, 0.0
    %v210 = vadd.f32 %v208, %v209
    %v211 = vsel %vm207, %v114, 0.0
    %v212 = vadd.f32 %v210, %v211
    %v213 = vsel %vm207, %v148, 0.0
    %v214 = vadd.f32 %v212, %v213
    %v215 = vsel %vm207, %v54, 0.0
    %v216 = vsel %vm207, %v88, 0.0
    %v217 = vadd.f32 %v215, %v216
    %v218 = vsel %vm207, %v122, 0.0
    %v219 = vadd.f32 %v217, %v218
    %v220 = vsel %vm207, %v156, 0.0
    %v221 = vadd.f32 %v219, %v220
    %v222 = vsel %vm207, %v53, 0.0
    %v223 = vsel %vm207, %v87, 0.0
    %v224 = vadd.f32 %v222, %v223
    %v225 = vsel %vm207, %v121, 0.0
    %v226 = vadd.f32 %v224, %v225
    %v227 = vsel %vm207, %v155, 0.0
    %v228 = vadd.f32 %v226, %v227
    %v229 = vsel %vm207, %v55, 0.0
    %v230 = vsel %vm207, %v89, 0.0
    %v231 = vadd.f32 %v229, %v230
    %v232 = vsel %vm207, %v123, 0.0
    %v233 = vadd.f32 %v231, %v232
    %v234 = vsel %vm207, %v157, 0.0
    %v235 = vadd.f32 %v233, %v234
    %v236 = vsel %vm207, %v63, 0.0
    %v237 = vsel %vm207, %v97, 0.0
    %v238 = vadd.f32 %v236, %v237
    %v239 = vsel %vm207, %v131, 0.0
    %v240 = vadd.f32 %v238, %v239
    %v241 = vsel %vm207, %v165, 0.0
    %v242 = vadd.f32 %v240, %v241
    %v243 = vsel %vm207, %v71, 0.0
    %v244 = vsel %vm207, %v105, 0.0
    %v245 = vadd.f32 %v243, %v244
    %v246 = vsel %vm207, %v139, 0.0
    %v247 = vadd.f32 %v245, %v246
    %v248 = vsel %vm207, %v173, 0.0
    %v249 = vadd.f32 %v247, %v248
    %v250 = vsel %vm207, %v70, 0.0
    %v251 = vsel %vm207, %v104, 0.0
    %v252 = vadd.f32 %v250, %v251
    %v253 = vsel %vm207, %v138, 0.0
    %v254 = vadd.f32 %v252, %v253
    %v255 = vsel %vm207, %v172, 0.0
    %v256 = vadd.f32 %v254, %v255
    %v257 = vsel %vm207, %v72, 0.0
    %v258 = vsel %vm207, %v106, 0.0
    %v259 = vadd.f32 %v257, %v258
    %v260 = vsel %vm207, %v140, 0.0
    %v261 = vadd.f32 %v259, %v260
    %v262 = vsel %vm207, %v174, 0.0
    %v263 = vadd.f32 %v261, %v262
    %v264 = vrcp.pop 4.0
    %v265 = vmul.f32 %v214, %v264
    %v266 = vmul.f32 %v221, %v264
    %v267 = vmul.f32 %v228, %v264
    %v268 = vmul.f32 %v235, %v264
    %v269 = vmul.f32 %v242, %v264
    %v270 = vmul.f32 %v249, %v264
    %v271 = vmul.f32 %v256, %v264
    %v272 = vmul.f32 %v263, %v264
    %v281 = vcombine.low %v265, %v266
    %v282 = vcombine.low %v267, %v268
    %v284 = vunpack.c.l.s4 1983009808
    %v285 = vunpack.c.0.s8 %v284
    %v286 = vlaneseq
    %v287 = vshrl.u32 %v286, 7
    %v288 = vsub.s32 %v285, %v287
    %v289 = vrot.slane %v281, %v288
    %v291 = vunpack.c.l.s4 1983009808
    %v292 = vunpack.c.0.s8 %v291
    %v293 = vlaneseq
    %v294 = vshrl.u32 %v293, 7
    %v295 = vsub.s32 %v292, %v294
    %v296 = vrot.slane %v282, %v295
    %v297 = vcombine.low %v289, %v296
    %v298 = vcombine.low %v269, %v270
    %v299 = vcombine.low %v271, %v272
    %v301 = vunpack.c.l.s4 1983009808
    %v302 = vunpack.c.0.s8 %v301
    %v303 = vlaneseq
    %v304 = vshrl.u32 %v303, 7
    %v305 = vsub.s32 %v302, %v304
    %v306 = vrot.slane %v298, %v305
    %v308 = vunpack.c.l.s4 1983009808
    %v309 = vunpack.c.0.s8 %v308
    %v310 = vlaneseq
    %v311 = vshrl.u32 %v310, 7
    %v312 = vsub.s32 %v309, %v311
    %v313 = vrot.slane %v299, %v312
    %v314 = vcombine.low %v306, %v313
    %v317 = vsub.f32 %v23, %v297
    %v318 = vsub.f32 %v24, %v314
    %v319 = vsub.f32 %v25, %v297
    %v320 = vsub.f32 %v26, %v314
    %v321 = vsub.f32 %v27, %v297
    %v322 = vsub.f32 %v28, %v314
    %v323 = vsub.f32 %v29, %v297
    %v324 = vsub.f32 %v30, %v314
    %v325 = vmul.f32 %v317, %v317
    %v326 = vmul.f32 %v318, %v318
    %v327 = vmul.f32 %v319, %v319
    %v328 = vmul.f32 %v320, %v320
    %v329 = vmul.f32 %v321, %v321
    %v330 = vmul.f32 %v322, %v322
    %v331 = vmul.f32 %v323, %v323
    %v332 = vmul.f32 %v324, %v324
    %v341 = vcombine.high %v325, %v325
    %v343 = vunpack.c.l.s4 1983009808
    %v344 = vunpack.c.0.s8 %v343
    %v345 = vlaneseq
    %v346 = vshrl.u32 %v345, 7
    %v347 = vsub.s32 %v344, %v346
    %v348 = vrot.slane %v325, %v347
    %v350 = vunpack.c.l.s4 1983009808
    %v351 = vunpack.c.0.s8 %v350
    %v352 = vlaneseq
    %v353 = vshrl.u32 %v352, 7
    %v354 = vsub.s32 %v351, %v353
    %v355 = vrot.slane %v341, %v354
    %v356 = vcombine.high %v348, %v348
    %v357 = vcombine.high %v355, %v355
    %v358 = vcombine.high %v326, %v326
    %v360 = vunpack.c.l.s4 1983009808
    %v361 = vunpack.c.0.s8 %v360
    %v362 = vlaneseq
    %v363 = vshrl.u32 %v362, 7
    %v364 = vsub.s32 %v361, %v363
    %v365 = vrot.slane %v326, %v364
    %v367 = vunpack.c.l.s4 1983009808
    %v368 = vunpack.c.0.s8 %v367
    %v369 = vlaneseq
    %v370 = vshrl.u32 %v369, 7
    %v371 = vsub.s32 %v368, %v370
    %v372 = vrot.slane %v358, %v371
    %v373 = vcombine.high %v365, %v365
    %v374 = vcombine.high %v372, %v372
    %v375 = vcombine.high %v327, %v327
    %v377 = vunpack.c.l.s4 1983009808
    %v378 = vunpack.c.0.s8 %v377
    %v379 = vlaneseq
    %v380 = vshrl.u32 %v379, 7
    %v381 = vsub.s32 %v378, %v380
    %v382 = vrot.slane %v327, %v381
    %v384 = vunpack.c.l.s4 1983009808
    %v385 = vunpack.c.0.s8 %v384
    %v386 = vlaneseq
    %v387 = vshrl.u32 %v386, 7
    %v388 = vsub.s32 %v385, %v387
    %v389 = vrot.slane %v375, %v388
    %v390 = vcombine.high %v382, %v382
    %v391 = vcombine.high %v389, %v389
    %v392 = vcombine.high %v328, %v328
    %v394 = vunpack.c.l.s4 1983009808
    %v395 = vunpack.c.0.s8 %v394
    %v396 = vlaneseq
    %v397 = vshrl.u32 %v396, 7
    %v398 = vsub.s32 %v395, %v397
    %v399 = vrot.slane %v328, %v398
    %v401 = vunpack.c.l.s4 1983009808
    %v402 = vunpack.c.0.s8 %v401
    %v403 = vlaneseq
    %v404 = vshrl.u32 %v403, 7
    %v405 = vsub.s32 %v402, %v404
    %v406 = vrot.slane %v392, %v405
    %v407 = vcombine.high %v399, %v399
    %v408 = vcombine.high %v406, %v406
    %v409 = vcombine.high %v329, %v329
    %v411 = vunpack.c.l.s4 1983009808
    %v412 = vunpack.c.0.s8 %v411
    %v413 = vlaneseq
    %v414 = vshrl.u32 %v413, 7
    %v415 = vsub.s32 %v412, %v414
    %v416 = vrot.slane %v329, %v415
    %v418 = vunpack.c.l.s4 1983009808
    %v419 = vunpack.c.0.s8 %v418
    %v420 = vlaneseq
    %v421 = vshrl.u32 %v420, 7
    %v422 = vsub.s32 %v419, %v421
    %v423 = vrot.slane %v409, %v422
    %v424 = vcombine.high %v416, %v416
    %v425 = vcombine.high %v423, %v423
    %v426 = vcombine.high %v330, %v330
    %v428 = vunpack.c.l.s4 1983009808
    %v429 = vunpack.c.0.s8 %v428
    %v430 = vlaneseq
    %v431 = vshrl.u32 %v430, 7
    %v432 = vsub.s32 %v429, %v431
    %v433 = vrot.slane %v330, %v432
    %v435 = vunpack.c.l.s4 1983009808
    %v436 = vunpack.c.0.s8 %v435
    %v437 = vlaneseq
    %v438 = vshrl.u32 %v437, 7
    %v439 = vsub.s32 %v436, %v438
    %v440 = vrot.slane %v426, %v439
    %v441 = vcombine.high %v433, %v433
    %v442 = vcombine.high %v440, %v440
    %v443 = vcombine.high %v331, %v331
    %v445 = vunpack.c.l.s4 1983009808
    %v446 = vunpack.c.0.s8 %v445
    %v447 = vlaneseq
    %v448 = vshrl.u32 %v447, 7
    %v449 = vsub.s32 %v446, %v448
    %v450 = vrot.slane %v331, %v449
    %v452 = vunpack.c.l.s4 1983009808
    %v453 = vunpack.c.0.s8 %v452
    %v454 = vlaneseq
    %v455 = vshrl.u32 %v454, 7
    %v456 = vsub.s32 %v453, %v455
    %v457 = vrot.slane %v443, %v456
    %v458 = vcombine.high %v450, %v450
    %v459 = vcombine.high %v457, %v457
    %v460 = vcombine.high %v332, %v332
    %v462 = vunpack.c.l.s4 1983009808
    %v463 = vunpack.c.0.s8 %v462
    %v464 = vlaneseq
    %v465 = vshrl.u32 %v464, 7
    %v466 = vsub.s32 %v463, %v465
    %v467 = vrot.slane %v332, %v466
    %v469 = vunpack.c.l.s4 1983009808
    %v470 = vunpack.c.0.s8 %v469
    %v471 = vlaneseq
    %v472 = vshrl.u32 %v471, 7
    %v473 = vsub.s32 %v470, %v472
    %v474 = vrot.slane %v460, %v473
    %v475 = vcombine.high %v467, %v467
    %v476 = vcombine.high %v474, %v474
    %v509 = vsel %vm207, %v348, 0.0
    %v510 = vsel %vm207, %v382, 0.0
    %v511 = vadd.f32 %v509, %v510
    %v512 = vsel %vm207, %v416, 0.0
    %v513 = vadd.f32 %v511, %v512
    %v514 = vsel %vm207, %v450, 0.0
    %v515 = vadd.f32 %v513, %v514
    %v516 = vsel %vm207, %v356, 0.0
    %v517 = vsel %vm207, %v390, 0.0
    %v518 = vadd.f32 %v516, %v517
    %v519 = vsel %vm207, %v424, 0.0
    %v520 = vadd.f32 %v518, %v519
    %v521 = vsel %vm207, %v458, 0.0
    %v522 = vadd.f32 %v520, %v521
    %v523 = vsel %vm207, %v355, 0.0
    %v524 = vsel %vm207, %v389, 0.0
    %v525 = vadd.f32 %v523, %v524
    %v526 = vsel %vm207, %v423, 0.0
    %v527 = vadd.f32 %v525, %v526
    %v528 = vsel %vm207, %v457, 0.0
    %v529 = vadd.f32 %v527, %v528
    %v530 = vsel %vm207, %v357, 0.0
    %v531 = vsel %vm207, %v391, 0.0
    %v532 = vadd.f32 %v530, %v531
    %v533 = vsel %vm207, %v425, 0.0
    %v534 = vadd.f32 %v532, %v533
    %v535 = vsel %vm207, %v459, 0.0
    %v536 = vadd.f32 %v534, %v535
    %v537 = vsel %vm207, %v365, 0.0
    %v538 = vsel %vm207, %v399, 0.0
    %v539 = vadd.f32 %v537, %v538
    %v540 = vsel %vm207, %v433, 0.0
    %v541 = vadd.f32 %v539, %v540
    %v542 = vsel %vm207, %v467, 0.0
    %v543 = vadd.f32 %v541, %v542
    %v544 = vsel %vm207, %v373, 0.0
    %v545 = vsel %vm207, %v407, 0.0
    %v546 = vadd.f32 %v544, %v545
    %v547 = vsel %vm207, %v441, 0.0
    %v548 = vadd.f32 %v546, %v547
    %v549 = vsel %vm207, %v475, 0.0
    %v550 = vadd.f32 %v548, %v549
    %v551 = vsel %vm207, %v372, 0.0
    %v552 = vsel %vm207, %v406, 0.0
    %v553 = vadd.f32 %v551, %v552
    %v554 = vsel %vm207, %v440, 0.0
    %v555 = vadd.f32 %v553, %v554
    %v556 = vsel %vm207, %v474, 0.0
    %v557 = vadd.f32 %v555, %v556
    %v558 = vsel %vm207, %v374, 0.0
    %v559 = vsel %vm207, %v408, 0.0
    %v560 = vadd.f32 %v558, %v559
    %v561 = vsel %vm207, %v442, 0.0
    %v562 = vadd.f32 %v560, %v561
    %v563 = vsel %vm207, %v476, 0.0
    %v564 = vadd.f32 %v562, %v563
    %v565 = vmul.f32 %v515, %v264
    %v566 = vmul.f32 %v522, %v264
    %v567 = vmul.f32 %v529, %v264
    %v568 = vmul.f32 %v536, %v264
    %v569 = vmul.f32 %v543, %v264
    %v570 = vmul.f32 %v550, %v264
    %v571 = vmul.f32 %v557, %v264
    %v572 = vmul.f32 %v564, %v264
    %v573 = vadd.f32 %v565, 1e-08
    %v574 = vadd.f32 %v566, 1e-08
    %v575 = vadd.f32 %v567, 1e-08
    %v576 = vadd.f32 %v568, 1e-08
    %v577 = vadd.f32 %v569, 1e-08
    %v578 = vadd.f32 %v570, 1e-08
    %v579 = vadd.f32 %v571, 1e-08
    %v580 = vadd.f32 %v572, 1e-08
    %v581 = vrsqrt.pop %v573
    %v582 = vmul.f32 %v573, %v581
    %vm583 = vcmp.eq.f32.partialorder %v573, inf
    %v584 = vsel %vm583, %v573, %v582
    %vm585 = vcmp.eq.f32.partialorder %v573, 0.0
    %v586 = vand.u32 %v573, 2147483648
    %v587 = vsel %vm585, %v586, %v584
    %v588 = vrsqrt.pop %v574
    %v589 = vmul.f32 %v574, %v588
    %vm590 = vcmp.eq.f32.partialorder %v574, inf
    %v591 = vsel %vm590, %v574, %v589
    %vm592 = vcmp.eq.f32.partialorder %v574, 0.0
    %v593 = vand.u32 %v574, 2147483648
    %v594 = vsel %vm592, %v593, %v591
    %v595 = vrsqrt.pop %v575
    %v596 = vmul.f32 %v575, %v595
    %vm597 = vcmp.eq.f32.partialorder %v575, inf
    %v598 = vsel %vm597, %v575, %v596
    %vm599 = vcmp.eq.f32.partialorder %v575, 0.0
    %v600 = vand.u32 %v575, 2147483648
    %v601 = vsel %vm599, %v600, %v598
    %v602 = vrsqrt.pop %v576
    %v603 = vmul.f32 %v576, %v602
    %vm604 = vcmp.eq.f32.partialorder %v576, inf
    %v605 = vsel %vm604, %v576, %v603
    %vm606 = vcmp.eq.f32.partialorder %v576, 0.0
    %v607 = vand.u32 %v576, 2147483648
    %v608 = vsel %vm606, %v607, %v605
    %v609 = vrsqrt.pop %v577
    %v610 = vmul.f32 %v577, %v609
    %vm611 = vcmp.eq.f32.partialorder %v577, inf
    %v612 = vsel %vm611, %v577, %v610
    %vm613 = vcmp.eq.f32.partialorder %v577, 0.0
    %v614 = vand.u32 %v577, 2147483648
    %v615 = vsel %vm613, %v614, %v612
    %v616 = vrsqrt.pop %v578
    %v617 = vmul.f32 %v578, %v616
    %vm618 = vcmp.eq.f32.partialorder %v578, inf
    %v619 = vsel %vm618, %v578, %v617
    %vm620 = vcmp.eq.f32.partialorder %v578, 0.0
    %v621 = vand.u32 %v578, 2147483648
    %v622 = vsel %vm620, %v621, %v619
    %v623 = vrsqrt.pop %v579
    %v624 = vmul.f32 %v579, %v623
    %vm625 = vcmp.eq.f32.partialorder %v579, inf
    %v626 = vsel %vm625, %v579, %v624
    %vm627 = vcmp.eq.f32.partialorder %v579, 0.0
    %v628 = vand.u32 %v579, 2147483648
    %v629 = vsel %vm627, %v628, %v626
    %v630 = vrsqrt.pop %v580
    %v631 = vmul.f32 %v580, %v630
    %vm632 = vcmp.eq.f32.partialorder %v580, inf
    %v633 = vsel %vm632, %v580, %v631
    %vm634 = vcmp.eq.f32.partialorder %v580, 0.0
    %v635 = vand.u32 %v580, 2147483648
    %v636 = vsel %vm634, %v635, %v633
    %v637 = vsel %vm207, %v587, 0.0
    %v638 = vsel %vm207, %v594, 0.0
    %v639 = vadd.f32 %v637, %v638
    %v640 = vsel %vm207, %v601, 0.0
    %v641 = vadd.f32 %v639, %v640
    %v642 = vsel %vm207, %v608, 0.0
    %v643 = vadd.f32 %v641, %v642
    %v644 = vsel %vm207, %v615, 0.0
    %v645 = vadd.f32 %v643, %v644
    %v646 = vsel %vm207, %v622, 0.0
    %v647 = vadd.f32 %v645, %v646
    %v648 = vsel %vm207, %v629, 0.0
    %v649 = vadd.f32 %v647, %v648
    %v650 = vsel %vm207, %v636, 0.0
    %v651 = vadd.f32 %v649, %v650
    %652 = vadd.xlane.f32.xlu0 %v651
    %v653 = vpop.xlane.xlu0 %652
    %v654 = vmul.f32 %v653, 0.0009765625
    %v656 = vcombine.low %v46, %v54
    %v657 = vcombine.low %v53, %v55
    %v659 = vunpack.c.l.s4 1983009808
    %v660 = vunpack.c.0.s8 %v659
    %v661 = vlaneseq
    %v662 = vshrl.u32 %v661, 7
    %v663 = vsub.s32 %v660, %v662
    %v664 = vrot.slane %v656, %v663
    %v666 = vunpack.c.l.s4 1983009808
    %v667 = vunpack.c.0.s8 %v666
    %v668 = vlaneseq
    %v669 = vshrl.u32 %v668, 7
    %v670 = vsub.s32 %v667, %v669
    %v671 = vrot.slane %v657, %v670
    %v672 = vcombine.low %v664, %v671
    %v673 = vcombine.low %v63, %v71
    %v674 = vcombine.low %v70, %v72
    %v676 = vunpack.c.l.s4 1983009808
    %v677 = vunpack.c.0.s8 %v676
    %v678 = vlaneseq
    %v679 = vshrl.u32 %v678, 7
    %v680 = vsub.s32 %v677, %v679
    %v681 = vrot.slane %v673, %v680
    %v683 = vunpack.c.l.s4 1983009808
    %v684 = vunpack.c.0.s8 %v683
    %v685 = vlaneseq
    %v686 = vshrl.u32 %v685, 7
    %v687 = vsub.s32 %v684, %v686
    %v688 = vrot.slane %v674, %v687
    %v689 = vcombine.low %v681, %v688
    %v690 = vcombine.low %v654, %v654
    %v692 = vunpack.c.l.s4 1983009808
    %v693 = vunpack.c.0.s8 %v692
    %v694 = vlaneseq
    %v695 = vshrl.u32 %v694, 7
    %v696 = vsub.s32 %v693, %v695
    %v697 = vrot.slane %v690, %v696
    %v698 = vcombine.low %v80, %v88
    %v699 = vcombine.low %v87, %v89
    %v701 = vunpack.c.l.s4 1983009808
    %v702 = vunpack.c.0.s8 %v701
    %v703 = vlaneseq
    %v704 = vshrl.u32 %v703, 7
    %v705 = vsub.s32 %v702, %v704
    %v706 = vrot.slane %v698, %v705
    %v708 = vunpack.c.l.s4 1983009808
    %v709 = vunpack.c.0.s8 %v708
    %v710 = vlaneseq
    %v711 = vshrl.u32 %v710, 7
    %v712 = vsub.s32 %v709, %v711
    %v713 = vrot.slane %v699, %v712
    %v714 = vcombine.low %v706, %v713
    %v715 = vcombine.low %v97, %v105
    %v716 = vcombine.low %v104, %v106
    %v718 = vunpack.c.l.s4 1983009808
    %v719 = vunpack.c.0.s8 %v718
    %v720 = vlaneseq
    %v721 = vshrl.u32 %v720, 7
    %v722 = vsub.s32 %v719, %v721
    %v723 = vrot.slane %v715, %v722
    %v725 = vunpack.c.l.s4 1983009808
    %v726 = vunpack.c.0.s8 %v725
    %v727 = vlaneseq
    %v728 = vshrl.u32 %v727, 7
    %v729 = vsub.s32 %v726, %v728
    %v730 = vrot.slane %v716, %v729
    %v731 = vcombine.low %v723, %v730
    %v732 = vcombine.low %v114, %v122
    %v733 = vcombine.low %v121, %v123
    %v735 = vunpack.c.l.s4 1983009808
    %v736 = vunpack.c.0.s8 %v735
    %v737 = vlaneseq
    %v738 = vshrl.u32 %v737, 7
    %v739 = vsub.s32 %v736, %v738
    %v740 = vrot.slane %v732, %v739
    %v742 = vunpack.c.l.s4 1983009808
    %v743 = vunpack.c.0.s8 %v742
    %v744 = vlaneseq
    %v745 = vshrl.u32 %v744, 7
    %v746 = vsub.s32 %v743, %v745
    %v747 = vrot.slane %v733, %v746
    %v748 = vcombine.low %v740, %v747
    %v749 = vcombine.low %v131, %v139
    %v750 = vcombine.low %v138, %v140
    %v752 = vunpack.c.l.s4 1983009808
    %v753 = vunpack.c.0.s8 %v752
    %v754 = vlaneseq
    %v755 = vshrl.u32 %v754, 7
    %v756 = vsub.s32 %v753, %v755
    %v757 = vrot.slane %v749, %v756
    %v759 = vunpack.c.l.s4 1983009808
    %v760 = vunpack.c.0.s8 %v759
    %v761 = vlaneseq
    %v762 = vshrl.u32 %v761, 7
    %v763 = vsub.s32 %v760, %v762
    %v764 = vrot.slane %v750, %v763
    %v765 = vcombine.low %v757, %v764
    %v766 = vcombine.low %v148, %v156
    %v767 = vcombine.low %v155, %v157
    %v769 = vunpack.c.l.s4 1983009808
    %v770 = vunpack.c.0.s8 %v769
    %v771 = vlaneseq
    %v772 = vshrl.u32 %v771, 7
    %v773 = vsub.s32 %v770, %v772
    %v774 = vrot.slane %v766, %v773
    %v776 = vunpack.c.l.s4 1983009808
    %v777 = vunpack.c.0.s8 %v776
    %v778 = vlaneseq
    %v779 = vshrl.u32 %v778, 7
    %v780 = vsub.s32 %v777, %v779
    %v781 = vrot.slane %v767, %v780
    %v782 = vcombine.low %v774, %v781
    %v783 = vcombine.low %v165, %v173
    %v784 = vcombine.low %v172, %v174
    %v786 = vunpack.c.l.s4 1983009808
    %v787 = vunpack.c.0.s8 %v786
    %v788 = vlaneseq
    %v789 = vshrl.u32 %v788, 7
    %v790 = vsub.s32 %v787, %v789
    %v791 = vrot.slane %v783, %v790
    %v793 = vunpack.c.l.s4 1983009808
    %v794 = vunpack.c.0.s8 %v793
    %v795 = vlaneseq
    %v796 = vshrl.u32 %v795, 7
    %v797 = vsub.s32 %v794, %v796
    %v798 = vrot.slane %v784, %v797
    %v799 = vcombine.low %v791, %v798
    %809 = vst [vmem:[#allocation5] sm:$0xff] %v672
    %810 = vst [vmem:[#allocation5 + $0x8] sm:$0xff] %v689
    %811 = vst [vmem:[#allocation5 + $0x10] sm:$0xf] %v697
    %812 = vst [vmem:[#allocation5 + $0x14] sm:$0xff] %v714
    %813 = vst [vmem:[#allocation5 + $0x1c] sm:$0xff] %v731
    %814 = vst [vmem:[#allocation5 + $0x24] sm:$0xf] %v697
    %815 = vst [vmem:[#allocation5 + $0x28] sm:$0xff] %v748
    %816 = vst [vmem:[#allocation5 + $0x30] sm:$0xff] %v765
    %817 = vst [vmem:[#allocation5 + $0x38] sm:$0xf] %v697
    %818 = vst [vmem:[#allocation5 + $0x3c] sm:$0xff] %v782
    %819 = vst [vmem:[#allocation5 + $0x44] sm:$0xff] %v799
    %820 = vst [vmem:[#allocation5 + $0x4c] sm:$0xf] %v697
    // Predicated region
    $region10: #{tpu_custom_call.1} parent=1 // pred_check
      _
    $region11: #{tpu_custom_call.1} parent=1 // pred_check_branch
      %822 = sbr.rel (0) target = $region13
    $region12: #{tpu_custom_call.1} parent=1 // pred_region
      %s824 = ssub.s32 1280, 1280
      %825 = vsyncadd [#allocation4], %s824
      %s826 = sshll.u32 [#allocation5], 4
      %s827 = int_to_ptr.vmem [resolvable:$true] %s826
      %832 = dma.vmem_to_hbm [thread:$0]  %s827, 1280, %s1, [#allocation4], 320, 320, 20
    $region13: #{tpu_custom_call.1} parent=1 // pred_fallthru
      _
    // Predicated region
    $region14: #{tpu_custom_call.1} parent=1 // pred_check
      _
    $region15: #{tpu_custom_call.1} parent=1 // pred_check_branch
      %834 = sbr.rel (0) target = $region17
    $region16: #{tpu_custom_call.1} parent=1 // pred_region
      %835 = dma.done [#allocation4], 1280
    $region17: #{tpu_custom_call.1} parent=1 // pred_fallthru
      _
    %836 = vsyncpa [#allocation3], 1
    %837 = vsyncpa [#allocation4], 1

</llo_original>
